<compile_context>
chip_gen: v7x
topology: tpu7x:2x2x1
jax: 0.10.0
libtpu: 0.0.40
codegen_flags: <defaults>
</compile_context>

<pallas_src>
import functools

import jax
import jax.numpy as jnp
from jax.experimental import pallas as pl
from jax.experimental.pallas import tpu as pltpu

SYMBOLS = ['dash', 'dcr', 'eth', 'ltc', 'sc', 'str', 'xmr', 'xrp']
NUM_ASSETS = len(SYMBOLS) + 1  # 9 (cash + 8 symbols)

_LANES = 128            # vreg lane width
_CHUNK_ROWS = 64        # rows folded per inner accumulation step (8 vregs/operand)
_MAX_TILE_ROWS = 2048   # 2048*128*4B = 1 MiB per f32 buffer; ~6 MiB double-buffered


def _round_up(a, b):
    return -(-a // b) * b


def _reward_kernel(x_ref, pp_ref, out_ref, *, valid_rows, chunk):
    # x_ref  : (tile_rows, 128)     VMEM, native dtype  (portfolio weights)
    # pp_ref : (2, tile_rows, 128)  VMEM, native dtype  ([0]=p_prev, [1]=p_last)
    # out_ref: (1, 8, 128)          VMEM, f32 per-block partial sums
    tile_rows = x_ref.shape[0]
    nchunks = tile_rows // chunk
    base = pl.program_id(0) * tile_rows
    # Hoisted out of the loop (JAX does not CSE broadcast/iota inside loops).
    row_iota = jax.lax.broadcasted_iota(jnp.int32, (chunk, _LANES), 0)

    def body(c, acc):
        r0 = pl.multiple_of(c * chunk, chunk)
        x = x_ref[pl.ds(r0, chunk), :].astype(jnp.float32)
        prev = pp_ref[0, pl.ds(r0, chunk), :].astype(jnp.float32)
        last = pp_ref[1, pl.ds(r0, chunk), :].astype(jnp.float32)
        # Exact divide on purpose: kernel is HBM-bandwidth-bound, the divide is
        # hidden under DMA; approx reciprocal would risk the 1e-5 tolerance.
        contrib = x * (last / prev)
        # Ragged-tail mask: select AFTER the divide, so garbage/Inf/NaN coming
        # from out-of-bounds rows of the last block is discarded by the select.
        valid = (row_iota + (base + r0)) < valid_rows
        return acc + jnp.where(valid, contrib, 0.0)

    acc = jax.lax.fori_loop(0, nchunks, body,
                            jnp.zeros((chunk, _LANES), jnp.float32))
    # Fold the chunk-row accumulator to one (8,128) vreg; unmasked full-vreg store.
    out_ref[...] = acc.reshape(chunk // 8, 8, _LANES).sum(axis=0)[None]


@jax.jit
def _reward_impl(x, prices):
    B, C, S, T = prices.shape
    if T < 2:
        raise ValueError("prices must have at least 2 time steps (T >= 2)")
    N = B * C * S
    if x.size != N:
        raise ValueError(f"x has {x.size} elements, expected {N}")

    rows = pl.cdiv(N, _LANES)          # number of 128-wide lane rows of real data
    rows_p = _round_up(rows, 8)        # pad rows to a sublane multiple (<= 7 rows)

    # Tile selection: aim for >= 2 blocks so both v7x TensorCores get work;
    # cap at 2048 rows so the double-buffered working set (~6 MiB) fits even
    # v5e's 16 MiB scoped-VMEM default (no vmem_limit_bytes needed).
    target = min(_MAX_TILE_ROWS, pl.cdiv(rows_p, 2))
    chunk = _CHUNK_ROWS if target >= _CHUNK_ROWS else _round_up(target, 8)
    tile_rows = _round_up(target, chunk)
    num_blocks = pl.cdiv(rows_p, tile_rows)
    pad = rows_p * _LANES - N          # <= 1023 elements, negligible

    # Single fused slice of the last two time columns -> prices streamed once.
    # Transpose so prev/last become lane-dense (rows_p, 128) planes; under jit
    # the slice/transpose/pad/reshape chain fuses into one producer fusion.
    pp = jax.lax.slice_in_dim(prices, T - 2, T, axis=3).reshape(N, 2).T   # (2, N)
    x_flat = x.reshape(N)
    if pad:
        # Pad values: x=0, prices=1 -> exact 0 contribution, no div-by-zero/NaN.
        pp = jnp.pad(pp, ((0, 0), (0, pad)), constant_values=1)
        x_flat = jnp.pad(x_flat, (0, pad))
    pp3 = pp.reshape(2, rows_p, _LANES)
    x2 = x_flat.reshape(rows_p, _LANES)

    bytes_accessed = (x2.size * x2.dtype.itemsize
                      + pp3.size * pp3.dtype.itemsize
                      + num_blocks * 8 * _LANES * 4)

    partials = pl.pallas_call(
        functools.partial(_reward_kernel, valid_rows=rows, chunk=chunk),
        out_shape=jax.ShapeDtypeStruct((num_blocks, 8, _LANES), jnp.float32),
        grid=(num_blocks,),
        in_specs=[
            pl.BlockSpec((tile_rows, _LANES), lambda i: (i, 0)),
            pl.BlockSpec((2, tile_rows, _LANES), lambda i: (0, i, 0)),
        ],
        out_specs=pl.BlockSpec((1, 8, _LANES), lambda i: (i, 0, 0)),
        compiler_params=pltpu.CompilerParams(
            dimension_semantics=("parallel",)),
        cost_estimate=pl.CostEstimate(
            flops=4 * N, transcendentals=0, bytes_accessed=bytes_accessed),
    )(x2, pp3)

    # Tiny epilogue reduction over (num_blocks, 8, 128) partials (fused by jit).
    return -jnp.sum(partials)


def reward_loss(x, y):
    """Pallas equivalent of RewardLoss.forward(x, y) with y = (prices, accum_loss)."""
    prices, _accum_loss = y            # accum_loss unused, as in the torch module
    return _reward_impl(x, prices)


if __name__ == "__main__":
    key = jax.random.PRNGKey(0)
    k_x, k_p = jax.random.split(key)

    B, C, S, T = 2, 4, NUM_ASSETS, 8   # small shapes consistent with forward
    # Portfolio weights (B*C, S) — simplex-normalized for realism.
    x = jax.random.uniform(k_x, (B * C, S), dtype=jnp.float32)
    x = x / jnp.sum(x, axis=-1, keepdims=True)
    # Positive prices (B, C, S, T).
    prices = jax.random.uniform(k_p, (B, C, S, T), dtype=jnp.float32,
                                minval=0.5, maxval=1.5)
    accum_loss = jnp.float32(0.0)      # unused by forward, kept for signature parity

    reward = reward_loss(x, (prices, accum_loss))
    reward = jax.block_until_ready(reward)

    # Pure-JAX reference check of the torch semantics.
    changes_ref = (prices[..., -1] / prices[..., -2]).reshape(-1, NUM_ASSETS)
    reward_ref = -jnp.sum(x * changes_ref)
    assert jnp.allclose(reward, reward_ref, rtol=1e-5, atol=1e-5), (reward, reward_ref)

    print("KERNEL_OK")
</pallas_src>

<mosaic_0001>
module attributes {stable_mosaic.version = 11 : i64} {
  func.func @_reward_kernel(%arg0: i32, %arg1: memref<8x128xf32, #tpu.memory_space<vmem>>, %arg2: memref<2x8x128xf32, #tpu.memory_space<vmem>>, %arg3: memref<1x8x128xf32, #tpu.memory_space<vmem>>) attributes {dimension_semantics = [#tpu.dimension_semantics<parallel>], iteration_bounds = array<i64: 1>, scalar_prefetch = 0 : i64, scratch_operands = 0 : i64, tpu.core_type = #tpu.core_type<tc>, window_params = [{transform_indices = @transform_0, window_bounds = array<i64: 8, 128>}, {transform_indices = @transform_1, window_bounds = array<i64: 2, 8, 128>}, {transform_indices = @transform_2, window_bounds = array<i64: 1, 8, 128>}]} {
    %c8_i32 = arith.constant 8 : i32
    %0 = arith.muli %arg0, %c8_i32 : i32
    %1 = tpu.iota {dimensions = array<i32: 0>} : vector<8x128xi32>
    %cst = arith.constant 0.000000e+00 : f32
    %2 = vector.broadcast %cst : f32 to vector<8x128xf32>
    %c0_i32 = arith.constant 0 : i32
    %c8_i32_0 = arith.constant 8 : i32
    %3 = arith.muli %c0_i32, %c8_i32_0 : i32
    %4 = tpu.assume_multiple %3, 8 : i32
    %5 = arith.index_cast %4 : i32 to index
    %c0 = arith.constant 0 : index
    %6 = vector.load %arg1[%5, %c0] : memref<8x128xf32, #tpu.memory_space<vmem>>, vector<8x128xf32>
    %c0_1 = arith.constant 0 : index
    %7 = arith.index_cast %4 : i32 to index
    %c0_2 = arith.constant 0 : index
    %8 = vector.load %arg2[%c0_1, %7, %c0_2] : memref<2x8x128xf32, #tpu.memory_space<vmem>>, vector<1x8x128xf32>
    %9 = vector.shape_cast %8 : vector<1x8x128xf32> to vector<8x128xf32>
    %c1 = arith.constant 1 : index
    %10 = arith.index_cast %4 : i32 to index
    %c0_3 = arith.constant 0 : index
    %11 = vector.load %arg2[%c1, %10, %c0_3] : memref<2x8x128xf32, #tpu.memory_space<vmem>>, vector<1x8x128xf32>
    %12 = vector.shape_cast %11 : vector<1x8x128xf32> to vector<8x128xf32>
    %13 = arith.divf %12, %9 : vector<8x128xf32>
    %14 = arith.mulf %6, %13 : vector<8x128xf32>
    %15 = arith.addi %0, %4 : i32
    %16 = vector.broadcast %15 : i32 to vector<8x128xi32>
    %17 = arith.addi %1, %16 : vector<8x128xi32>
    %c1_i32 = arith.constant 1 : i32
    %18 = vector.broadcast %c1_i32 : i32 to vector<8x128xi32>
    %19 = arith.cmpi slt, %17, %18 : vector<8x128xi32>
    %cst_4 = arith.constant 0.000000e+00 : f32
    %20 = vector.broadcast %cst_4 : f32 to vector<8x128xf32>
    %21 = arith.select %19, %14, %20 : vector<8x128xi1>, vector<8x128xf32>
    %22 = arith.addf %2, %21 : vector<8x128xf32>
    %c1_i32_5 = arith.constant 1 : i32
    %23 = vector.shape_cast %22 : vector<8x128xf32> to vector<1x8x128xf32>
    %cst_6 = arith.constant dense<0.000000e+00> : vector<8x128xf32>
    %24 = vector.multi_reduction <add>, %23, %cst_6 [0] : vector<1x8x128xf32> to vector<8x128xf32>
    %25 = vector.shape_cast %24 : vector<8x128xf32> to vector<1x8x128xf32>
    %c0_7 = arith.constant 0 : index
    %c0_8 = arith.constant 0 : index
    %c0_9 = arith.constant 0 : index
    %26 = vector.load %arg3[%c0_7, %c0_8, %c0_9] : memref<1x8x128xf32, #tpu.memory_space<vmem>>, vector<1x8x128xf32>
    tpu.vector_store %arg3[%c0_7, %c0_8, %c0_9], %25 {strides = array<i32>} : memref<1x8x128xf32, #tpu.memory_space<vmem>>, vector<1x8x128xf32>,
    return
  }
  func.func @transform_0(%arg0: i32) -> (i32, i32) {
    %c0_i32 = arith.constant 0 : i32
    %c0_i32_0 = arith.constant 0 : i32
    return %arg0, %c0_i32 : i32, i32
  }
  func.func @transform_1(%arg0: i32) -> (i32, i32, i32) {
    %c0_i32 = arith.constant 0 : i32
    %c0_i32_0 = arith.constant 0 : i32
    %c0_i32_1 = arith.constant 0 : i32
    return %c0_i32, %arg0, %c0_i32_0 : i32, i32, i32
  }
  func.func @transform_2(%arg0: i32) -> (i32, i32, i32) {
    %c0_i32 = arith.constant 0 : i32
    %c0_i32_0 = arith.constant 0 : i32
    %c0_i32_1 = arith.constant 0 : i32
    return %arg0, %c0_i32, %c0_i32_0 : i32, i32, i32
  }
}

</mosaic_0001>

<llo_original>
// kernel: _reward_impl.1
$region0: #{_reward_impl.1}
  #allocation0 [shape = 'u32[]', space=smem, size = 0x4, offset = 0x4, fixed_abs, tag = 'smem constant byte address 0x4 - core index']
  #allocation1 [shape = 'u32[144,128]{1,0:T(1,128)}', space=vmem, size = 0x12000, scoped, tag = 'internal scratch']
  %s0 = inlined_call_operand.vmem [shape: f32[8,128], index: 0, kind: input, shape index: {}]
  %s1 = inlined_call_operand.vmem [shape: f32[2,8,128], index: 1, kind: input, shape index: {}]
  %s2 = inlined_call_operand.vmem [shape: f32[1,8,128], index: 2, kind: output, shape index: {}]
  %s3 = sld [smem:[#allocation0]]
  $region18: #{_reward_impl.1} parent=0
    _
  %s5 = ssub.s32 1, %s3
  %s6 = scalar_select 0, %s5, %s3
  // Predicated region
  $region2: #{_reward_impl.1} parent=0 // pred_check
    _
  $region3: #{_reward_impl.1} parent=0 // pred_check_branch
    %8 = sbr.rel (0) target = $region5
  $region4: #{_reward_impl.1} parent=0 // pred_region
    _
  $region5: #{_reward_impl.1} parent=0 // pred_fallthru
    _
  // Predicated region
  $region6: #{_reward_impl.1} parent=0 // pred_check
    _
  $region7: #{_reward_impl.1} parent=0 // pred_check_branch
    %10 = sbr.rel (0) target = $region9
  $region8: #{_reward_impl.1} parent=0 // pred_region
    _
  $region9: #{_reward_impl.1} parent=0 // pred_fallthru
    _
  %s11 = smul.u32 0, 8
  %v12 = vlaneseq
  %v13 = vshrl.u32 %v12, 7
  %v14 = vld [vmem:[%s0] sm:$0xff]
  %v15 = vld [vmem:[%s1] sm:$0xff]
  %s16 = sadd.s32 0, 8
  %s17 = scalar_lea.vmem %s1, %s16
  %v18 = vld [vmem:[%s17] sm:$0xff]
  %v19 = vrcp.pop %v15
  %v20 = vmul.f32 %v18, %v19
  %v21 = vmul.f32 %v14, %v20
  %s22 = sadd.s32 %s11, 0
  %v23 = vstv %s22
  %v24 = vadd.s32 %v13, %v23
  %vm25 = vcmp.lt.s32.totalorder %v24, 1
  %v26 = vsel %vm25, %v21, 0.0
  %v27 = vadd.f32 %v26, 0.0
  %v28 = vadd.f32 %v27, 0.0
  %29 = vst [vmem:[%s2] sm:$0xff] %v28
  // Predicated region
  $region10: #{_reward_impl.1} parent=0 // pred_check
    _
  $region11: #{_reward_impl.1} parent=0 // pred_check_branch
    %31 = sbr.rel (0) target = $region13
  $region12: #{_reward_impl.1} parent=0 // pred_region
    _
  $region13: #{_reward_impl.1} parent=0 // pred_fallthru
    _
  // Predicated region
  $region14: #{_reward_impl.1} parent=0 // pred_check
    _
  $region15: #{_reward_impl.1} parent=0 // pred_check_branch
    %33 = sbr.rel (0) target = $region17
  $region16: #{_reward_impl.1} parent=0 // pred_region
    _
  $region17: #{_reward_impl.1} parent=0 // pred_fallthru
    _

</llo_original>
